<compile_context>
chip_gen: v6e
topology: v6e:2x2x1
jax: 0.10.0
libtpu: 0.0.40
codegen_flags: <defaults>
</compile_context>

<pallas_src>
import functools

import jax
import jax.numpy as jnp
from jax.experimental import pallas as pl
from jax.experimental.pallas import tpu as pltpu

_LANES = 128        # lane width (last dim)
_MAX_TILE_ROWS = 1024  # 1024 x 128 x 4B = 512 KiB per input tile


def _iou_kernel(p_ref, t_ref, out_ref, inter_acc, total_acc, *, smooth):
    step = pl.program_id(0)

    @pl.when(step == 0)
    def _init():
        inter_acc[...] = jnp.zeros_like(inter_acc)
        total_acc[...] = jnp.zeros_like(total_acc)

    p = p_ref[...].astype(jnp.float32)   # (TM, 128)
    t = t_ref[...].astype(jnp.float32)   # (TM, 128)

    # Lane/sublane-wise partial sums: pure VALU work, hidden under the DMA.
    inter_acc[...] += p * t
    total_acc[...] += p + t

    @pl.when(step == pl.num_programs(0) - 1)
    def _finalize():
        intersection = jnp.sum(inter_acc[...])
        total = jnp.sum(total_acc[...])
        union = total - intersection
        iou = (intersection + smooth) / (union + smooth)
        out_ref[0, 0] = 1.0 - iou


def iou_loss(pred, targets, smooth=1.0):
    """Pallas TPU implementation of IoULoss.forward(pred, targets, smooth)."""
    p = pred.reshape(-1)
    t = targets.reshape(-1)
    n = int(p.shape[0])

    # Rows of 128 lanes; round rows up to a multiple of 8 (sublane tiling).
    rows_needed = -(-n // _LANES)
    rows_needed = max(8, -(-rows_needed // 8) * 8)
    tile_rows = min(_MAX_TILE_ROWS, rows_needed)
    num_tiles = -(-rows_needed // tile_rows)
    rows_pad = num_tiles * tile_rows
    n_pad = rows_pad * _LANES

    # Zero padding is exact: it adds 0 to both intersection and total.
    if n_pad != n:
        p = jnp.pad(p, (0, n_pad - n))
        t = jnp.pad(t, (0, n_pad - n))
    p2 = p.reshape(rows_pad, _LANES)
    t2 = t.reshape(rows_pad, _LANES)

    kernel = functools.partial(_iou_kernel, smooth=float(smooth))

    out = pl.pallas_call(
        kernel,
        out_shape=jax.ShapeDtypeStruct((1, 1), jnp.float32),
        grid=(num_tiles,),
        in_specs=[
            pl.BlockSpec((tile_rows, _LANES), lambda i: (i, 0)),
            pl.BlockSpec((tile_rows, _LANES), lambda i: (i, 0)),
        ],
        out_specs=pl.BlockSpec(memory_space=pltpu.MemorySpace.SMEM),
        scratch_shapes=[
            pltpu.VMEM((tile_rows, _LANES), jnp.float32),
            pltpu.VMEM((tile_rows, _LANES), jnp.float32),
        ],
        compiler_params=pltpu.CompilerParams(
            dimension_semantics=("arbitrary",),
        ),
    )(p2, t2)
    return out[0, 0]


def _reference(pred, targets, smooth=1.0):
    p = pred.reshape(-1).astype(jnp.float32)
    t = targets.reshape(-1).astype(jnp.float32)
    intersection = jnp.sum(p * t)
    total = jnp.sum(p + t)
    union = total - intersection
    return 1.0 - (intersection + smooth) / (union + smooth)


if __name__ == "__main__":
    key = jax.random.PRNGKey(0)
    k1, k2, k3, k4 = jax.random.split(key, 4)

    # Small shape consistent with the module (segmentation-style pred/target).
    pred1 = jax.nn.sigmoid(jax.random.normal(k1, (2, 1, 16, 16), dtype=jnp.float32))
    tgt1 = (jax.random.uniform(k2, (2, 1, 16, 16)) > 0.5).astype(jnp.float32)
    loss1 = iou_loss(pred1, tgt1)
    jax.block_until_ready(loss1)
    ref1 = _reference(pred1, tgt1)
    assert jnp.allclose(loss1, ref1, rtol=1e-5, atol=1e-5), (loss1, ref1)

    # Slightly larger shape to exercise the multi-tile grid + padding path.
    pred2 = jax.nn.sigmoid(jax.random.normal(k3, (2, 3, 256, 250), dtype=jnp.float32))
    tgt2 = (jax.random.uniform(k4, (2, 3, 256, 250)) > 0.5).astype(jnp.float32)
    loss2 = iou_loss(pred2, tgt2)
    jax.block_until_ready(loss2)
    ref2 = _reference(pred2, tgt2)
    assert jnp.allclose(loss2, ref2, rtol=1e-4, atol=1e-5), (loss2, ref2)

    print("KERNEL_OK")
</pallas_src>

<mosaic_0001>
module attributes {stable_mosaic.version = 11 : i64} {
  func.func @_iou_kernel(%arg0: i32, %arg1: memref<8x128xf32, #tpu.memory_space<vmem>>, %arg2: memref<8x128xf32, #tpu.memory_space<vmem>>, %arg3: memref<1x1xf32, #tpu.memory_space<smem>>, %arg4: memref<8x128xf32, #tpu.memory_space<vmem>>, %arg5: memref<8x128xf32, #tpu.memory_space<vmem>>) attributes {dimension_semantics = [#tpu.dimension_semantics<arbitrary>], iteration_bounds = array<i64: 1>, scalar_prefetch = 0 : i64, scratch_operands = 2 : i64, tpu.core_type = #tpu.core_type<tc>, window_params = [{transform_indices = @transform_0, window_bounds = array<i64: 8, 128>}, {transform_indices = @transform_1, window_bounds = array<i64: 8, 128>}, {transform_indices = @transform_2, window_bounds = array<i64: 1, 1>}]} {
    %c0_i32 = arith.constant 0 : i32
    %0 = arith.cmpi eq, %arg0, %c0_i32 : i32
    %1 = arith.extui %0 : i1 to i32
    %c0_i32_0 = arith.constant 0 : i32
    %2 = arith.cmpi ne, %1, %c0_i32_0 : i32
    scf.if %2 {
      %cst = arith.constant 0.000000e+00 : f32
      %16 = vector.broadcast %cst : f32 to vector<8x128xf32>
      %c0_14 = arith.constant 0 : index
      %c0_15 = arith.constant 0 : index
      %17 = vector.load %arg4[%c0_14, %c0_15] : memref<8x128xf32, #tpu.memory_space<vmem>>, vector<8x128xf32>
      tpu.vector_store %arg4[%c0_14, %c0_15], %16 {strides = array<i32>} : memref<8x128xf32, #tpu.memory_space<vmem>>, vector<8x128xf32>,
      %cst_16 = arith.constant 0.000000e+00 : f32
      %18 = vector.broadcast %cst_16 : f32 to vector<8x128xf32>
      %c0_17 = arith.constant 0 : index
      %c0_18 = arith.constant 0 : index
      %19 = vector.load %arg5[%c0_17, %c0_18] : memref<8x128xf32, #tpu.memory_space<vmem>>, vector<8x128xf32>
      tpu.vector_store %arg5[%c0_17, %c0_18], %18 {strides = array<i32>} : memref<8x128xf32, #tpu.memory_space<vmem>>, vector<8x128xf32>,
    } else {
    }
    %c0 = arith.constant 0 : index
    %c0_1 = arith.constant 0 : index
    %3 = vector.load %arg1[%c0, %c0_1] : memref<8x128xf32, #tpu.memory_space<vmem>>, vector<8x128xf32>
    %c0_2 = arith.constant 0 : index
    %c0_3 = arith.constant 0 : index
    %4 = vector.load %arg2[%c0_2, %c0_3] : memref<8x128xf32, #tpu.memory_space<vmem>>, vector<8x128xf32>
    %c0_4 = arith.constant 0 : index
    %c0_5 = arith.constant 0 : index
    %5 = vector.load %arg4[%c0_4, %c0_5] : memref<8x128xf32, #tpu.memory_space<vmem>>, vector<8x128xf32>
    %6 = arith.mulf %3, %4 : vector<8x128xf32>
    %7 = arith.addf %5, %6 : vector<8x128xf32>
    %c0_6 = arith.constant 0 : index
    %c0_7 = arith.constant 0 : index
    %8 = vector.load %arg4[%c0_6, %c0_7] : memref<8x128xf32, #tpu.memory_space<vmem>>, vector<8x128xf32>
    tpu.vector_store %arg4[%c0_6, %c0_7], %7 {strides = array<i32>} : memref<8x128xf32, #tpu.memory_space<vmem>>, vector<8x128xf32>,
    %c0_8 = arith.constant 0 : index
    %c0_9 = arith.constant 0 : index
    %9 = vector.load %arg5[%c0_8, %c0_9] : memref<8x128xf32, #tpu.memory_space<vmem>>, vector<8x128xf32>
    %10 = arith.addf %3, %4 : vector<8x128xf32>
    %11 = arith.addf %9, %10 : vector<8x128xf32>
    %c0_10 = arith.constant 0 : index
    %c0_11 = arith.constant 0 : index
    %12 = vector.load %arg5[%c0_10, %c0_11] : memref<8x128xf32, #tpu.memory_space<vmem>>, vector<8x128xf32>
    tpu.vector_store %arg5[%c0_10, %c0_11], %11 {strides = array<i32>} : memref<8x128xf32, #tpu.memory_space<vmem>>, vector<8x128xf32>,
    %c0_i32_12 = arith.constant 0 : i32
    %13 = arith.cmpi eq, %arg0, %c0_i32_12 : i32
    %14 = arith.extui %13 : i1 to i32
    %c0_i32_13 = arith.constant 0 : i32
    %15 = arith.cmpi ne, %14, %c0_i32_13 : i32
    scf.if %15 {
      %c0_14 = arith.constant 0 : index
      %c0_15 = arith.constant 0 : index
      %16 = vector.load %arg4[%c0_14, %c0_15] : memref<8x128xf32, #tpu.memory_space<vmem>>, vector<8x128xf32>
      %17 = vector.shape_cast %16 : vector<8x128xf32> to vector<1x8x128xf32>
      %cst = arith.constant dense<0.000000e+00> : vector<1xf32>
      %18 = vector.multi_reduction <add>, %17, %cst [1, 2] : vector<1x8x128xf32> to vector<1xf32>
      %19 = vector.shape_cast %18 : vector<1xf32> to vector<1x1x1xf32>
      %20 = vector.extract %19[0, 0, 0] : f32 from vector<1x1x1xf32>
      %c0_16 = arith.constant 0 : index
      %c0_17 = arith.constant 0 : index
      %21 = vector.load %arg5[%c0_16, %c0_17] : memref<8x128xf32, #tpu.memory_space<vmem>>, vector<8x128xf32>
      %22 = vector.shape_cast %21 : vector<8x128xf32> to vector<1x8x128xf32>
      %cst_18 = arith.constant dense<0.000000e+00> : vector<1xf32>
      %23 = vector.multi_reduction <add>, %22, %cst_18 [1, 2] : vector<1x8x128xf32> to vector<1xf32>
      %24 = vector.shape_cast %23 : vector<1xf32> to vector<1x1x1xf32>
      %25 = vector.extract %24[0, 0, 0] : f32 from vector<1x1x1xf32>
      %26 = arith.subf %25, %20 : f32
      %cst_19 = arith.constant 1.000000e+00 : f32
      %27 = arith.addf %20, %cst_19 : f32
      %cst_20 = arith.constant 1.000000e+00 : f32
      %28 = arith.addf %26, %cst_20 : f32
      %29 = arith.divf %27, %28 : f32
      %cst_21 = arith.constant 1.000000e+00 : f32
      %30 = arith.subf %cst_21, %29 : f32
      %c0_22 = arith.constant 0 : index
      %c0_23 = arith.constant 0 : index
      %31 = memref.load %arg3[%c0_22, %c0_23] : memref<1x1xf32, #tpu.memory_space<smem>>
      memref.store %30, %arg3[%c0_22, %c0_23] : memref<1x1xf32, #tpu.memory_space<smem>>
    } else {
    }
    return
  }
  func.func @transform_0(%arg0: i32) -> (i32, i32) {
    %c0_i32 = arith.constant 0 : i32
    %c0_i32_0 = arith.constant 0 : i32
    return %arg0, %c0_i32 : i32, i32
  }
  func.func @transform_1(%arg0: i32) -> (i32, i32) {
    %c0_i32 = arith.constant 0 : i32
    %c0_i32_0 = arith.constant 0 : i32
    return %arg0, %c0_i32 : i32, i32
  }
  func.func @transform_2(%arg0: i32) -> (i32, i32) {
    %c0_i32 = arith.constant 0 : i32
    %c0_i32_0 = arith.constant 0 : i32
    %c0_i32_1 = arith.constant 0 : i32
    return %c0_i32, %c0_i32_0 : i32, i32
  }
}

</mosaic_0001>

<llo_original>
// kernel: tpu_custom_call.1
$region0: #{tpu_custom_call.1}
  #allocation0 [shape = 'u32[]', space=smem, size = 0x4, offset = 0x4, fixed_abs, tag = 'smem constant byte address 0x4 - core index']
  #allocation1 [shape = 'u32[144,128]{1,0:T(1,128)}', space=vmem, size = 0x12000, scoped, tag = 'internal scratch']
  #allocation2 [shape = 'f32[8,128]{1,0:T(8,128)}', space=vmem, size = 0x1000, scoped, tag = 'scratch operand']
  #allocation3 [shape = 'f32[8,128]{1,0:T(8,128)}', space=vmem, size = 0x1000, scoped, tag = 'scratch operand']
  %s0 = inlined_call_operand.hbm [shape: f32[8,128], index: 0, kind: input, shape index: {}]
  %s1 = inlined_call_operand.hbm [shape: f32[8,128], index: 1, kind: input, shape index: {}]
  %s2 = inlined_call_operand.hbm [shape: f32[1,1], index: 2, kind: output, shape index: {}]
  %s3 = sld [smem:[#allocation0]]
  $region34: #{tpu_custom_call.1} parent=0
    _
  %s5 = ssub.s32 1, %s3
  %s6 = scalar_select 0, %s5, %s3
  $region1: #{tpu_custom_call.1} parent=0
    #allocation4 [shape = 'u8[4096]{0}', space=vmem, size = 0x1000, scoped, tag = 'input window, operand 0, single buffered']
    #allocation5 [shape = 's32[1]{0}', space=sflag, size = 0x4, scoped, tag = 'scoped memory for tpu_custom_call.1']
    #allocation6 [shape = 's32[1]{0}', space=sflag, size = 0x4, scoped, tag = 'scoped memory for tpu_custom_call.1']
    #allocation7 [shape = 'u8[4096]{0}', space=vmem, size = 0x1000, scoped, tag = 'input window, operand 1, single buffered']
    #allocation8 [shape = 's32[1]{0}', space=sflag, size = 0x4, scoped, tag = 'scoped memory for tpu_custom_call.1']
    #allocation9 [shape = 'u8[512]{0}', space=smem, size = 0x200, scoped, tag = 'output window, operand 0, single buffered']
    %7 = vsyncpa [#allocation5], 0
    %8 = vsyncpa [#allocation8], 0
    %9 = vsyncpa [#allocation6], 0
    // Predicated region
    $region2: #{tpu_custom_call.1} parent=1 // pred_check
      _
    $region3: #{tpu_custom_call.1} parent=1 // pred_check_branch
      %11 = sbr.rel (0) target = $region5
    $region4: #{tpu_custom_call.1} parent=1 // pred_region
      %s13 = ssub.s32 128, 128
      %14 = vsyncadd [#allocation5], %s13
      %s16 = sshll.u32 [#allocation4], 4
      %s17 = int_to_ptr.vmem [resolvable:$true] %s16
      %19 = dma.hbm_to_vmem [thread:$0]  %s0, 128, %s17, [#allocation5]
    $region5: #{tpu_custom_call.1} parent=1 // pred_fallthru
      _
    // Predicated region
    $region6: #{tpu_custom_call.1} parent=1 // pred_check
      _
    $region7: #{tpu_custom_call.1} parent=1 // pred_check_branch
      %21 = sbr.rel (0) target = $region9
    $region8: #{tpu_custom_call.1} parent=1 // pred_region
      %s23 = ssub.s32 128, 128
      %24 = vsyncadd [#allocation8], %s23
      %s26 = sshll.u32 [#allocation7], 4
      %s27 = int_to_ptr.vmem [resolvable:$true] %s26
      %29 = dma.hbm_to_vmem [thread:$0]  %s1, 128, %s27, [#allocation8]
    $region9: #{tpu_custom_call.1} parent=1 // pred_fallthru
      _
    // Predicated region
    $region10: #{tpu_custom_call.1} parent=1 // pred_check
      _
    $region11: #{tpu_custom_call.1} parent=1 // pred_check_branch
      %31 = sbr.rel (0) target = $region13
    $region12: #{tpu_custom_call.1} parent=1 // pred_region
      %32 = dma.done [#allocation5], 128
    $region13: #{tpu_custom_call.1} parent=1 // pred_fallthru
      _
    // Predicated region
    $region14: #{tpu_custom_call.1} parent=1 // pred_check
      _
    $region15: #{tpu_custom_call.1} parent=1 // pred_check_branch
      %34 = sbr.rel (0) target = $region17
    $region16: #{tpu_custom_call.1} parent=1 // pred_region
      %35 = dma.done [#allocation8], 128
    $region17: #{tpu_custom_call.1} parent=1 // pred_fallthru
      _
    %p36 = scmp.eq.s32.totalorder 0, 0
    // Predicated region
    $region18: #{tpu_custom_call.1} parent=1 // pred_check
      %p37 = pneg %p36
    $region19: #{tpu_custom_call.1} parent=1 // pred_check_branch
      %39 = sbr.rel (%p37) target = $region21
    $region20: #{tpu_custom_call.1} parent=1 // pred_region
      %40 = vst [vmem:[#allocation2] sm:$0xff] 0.0
      %41 = vst [vmem:[#allocation3] sm:$0xff] 0.0
    $region21: #{tpu_custom_call.1} parent=1 // pred_fallthru
      _
    %v42 = vld [vmem:[#allocation4] sm:$0xff]
    %v43 = vld [vmem:[#allocation7] sm:$0xff]
    %v44 = vld [vmem:[#allocation2] sm:$0xff]
    %v45 = vmul.f32 %v42, %v43
    %v46 = vadd.f32 %v44, %v45
    %47 = vst [vmem:[#allocation2] sm:$0xff] %v46
    %v48 = vld [vmem:[#allocation3] sm:$0xff]
    %v49 = vadd.f32 %v42, %v43
    %v50 = vadd.f32 %v48, %v49
    %51 = vst [vmem:[#allocation3] sm:$0xff] %v50
    // Predicated region
    $region22: #{tpu_custom_call.1} parent=1 // pred_check
      %p52 = pneg %p36
    $region23: #{tpu_custom_call.1} parent=1 // pred_check_branch
      %54 = sbr.rel (%p52) target = $region25
    $region24: #{tpu_custom_call.1} parent=1 // pred_region
      %v55 = vld [vmem:[#allocation2] sm:$0xff]
      %56 = vadd.xlane.f32.xlu0 %v55
      %v57 = vpop.xlane.xlu0 %56
      %v58 = vrot.slane %v57, 4
      %v59 = vadd.f32 %v57, %v58
      %v60 = vrot.slane %v59, 2
      %v61 = vadd.f32 %v59, %v60
      %v62 = vrot.slane %v61, 1
      %v63 = vadd.f32 %v61, %v62
      %s64 = vtos %v63
      %v65 = vld [vmem:[#allocation3] sm:$0xff]
      %66 = vadd.xlane.f32.xlu0 %v65
      %v67 = vpop.xlane.xlu0 %66
      %v68 = vrot.slane %v67, 4
      %v69 = vadd.f32 %v67, %v68
      %v70 = vrot.slane %v69, 2
      %v71 = vadd.f32 %v69, %v70
      %v72 = vrot.slane %v71, 1
      %v73 = vadd.f32 %v71, %v72
      %s74 = vtos %v73
      %s75 = ssub.f32 %s74, %s64
      %s76 = sadd.f32 %s64, 1.0
      %s77 = sadd.f32 %s75, 1.0
      %v78 = vstv %s77
      %v79 = vrcp.pop %v78
      %s80 = vtos %v79
      %s81 = smul.f32 %s76, %s80
      %s82 = ssub.f32 1.0, %s81
      %s83 = scalar_lea.smem [#allocation9], 0
      %84 = sst [smem:[%s83]] %s82
    $region25: #{tpu_custom_call.1} parent=1 // pred_fallthru
      _
    // Predicated region
    $region26: #{tpu_custom_call.1} parent=1 // pred_check
      _
    $region27: #{tpu_custom_call.1} parent=1 // pred_check_branch
      %86 = sbr.rel (0) target = $region29
    $region28: #{tpu_custom_call.1} parent=1 // pred_region
      %s88 = ssub.s32 16, 16
      %89 = vsyncadd [#allocation6], %s88
      %92 = dma.smem_to_hbm [#allocation9], 16, %s2, [#allocation6]
    $region29: #{tpu_custom_call.1} parent=1 // pred_fallthru
      _
    // Predicated region
    $region30: #{tpu_custom_call.1} parent=1 // pred_check
      _
    $region31: #{tpu_custom_call.1} parent=1 // pred_check_branch
      %94 = sbr.rel (0) target = $region33
    $region32: #{tpu_custom_call.1} parent=1 // pred_region
      %95 = dma.done [#allocation6], 16
    $region33: #{tpu_custom_call.1} parent=1 // pred_fallthru
      _
    %96 = sfence
    %97 = vsyncpa [#allocation5], 1
    %98 = vsyncpa [#allocation8], 1
    %99 = vsyncpa [#allocation6], 1

</llo_original>
